<compile_context>
chip_gen: v7x
topology: tpu7x:2x2x1
jax: 0.10.0
libtpu: 0.0.40
codegen_flags: <defaults>
</compile_context>

<pallas_src>
import functools

import jax
import jax.numpy as jnp
from jax.experimental import pallas as pl
from jax.experimental.pallas import tpu as pltpu


def _round_up(x, m):
    return (x + m - 1) // m * m


def _emb_linear_kernel(x_ref, w_ref, b_ref, o_ref):
    # x_ref : (TM, K)   bf16 tile of token embeddings
    # w_ref : (K, Np)   bf16 full (transposed, lane-padded) weight, resident
    # b_ref : (1, Np)   f32 bias row, resident (no per-tile cast needed)
    # o_ref : (TM, Np)  output tile
    acc = jnp.dot(x_ref[...], w_ref[...], preferred_element_type=jnp.float32)
    o_ref[...] = (acc + b_ref[...]).astype(o_ref.dtype)


@functools.partial(jax.jit, static_argnames=("tile_m",))
def emb_linear_pallas(x, w_t, b, *, tile_m=512):
    """y = x @ w_t + b   (x: [M, K], w_t: [K, N], b: [N]) via Pallas."""
    M, K = x.shape
    K2, N = w_t.shape
    assert K == K2
    out_dtype = x.dtype
    out_bytes = jnp.dtype(out_dtype).itemsize

    # bf16 matmul inputs (f32 accumulate in-kernel).
    x_bf = x.astype(jnp.bfloat16)
    w_bf = w_t.astype(jnp.bfloat16)

    # Lane-dense output: pad N up to a multiple of 128 with zero columns.
    Np = _round_up(N, 128)
    if Np != N:
        w_bf = jnp.pad(w_bf, ((0, 0), (0, Np - N)))
        b_p = jnp.pad(b.astype(jnp.float32), (0, Np - N))
    else:
        b_p = b.astype(jnp.float32)
    b2 = b_p.reshape(1, Np)

    # M tile: big by default, multiple of 16 (bf16 sublane packing), capped at
    # the padded M and shrunk to fit a conservative VMEM budget (safe for
    # v5e's 16 MiB default scoped VMEM; ample headroom on v6e/v7x).
    tm = max(16, min(tile_m, _round_up(M, 16)))
    tm = _round_up(tm, 16)

    def _vmem_bytes(t):
        return (K * Np * 2            # resident bf16 weight
                + Np * 4              # resident f32 bias
                + 2 * t * K * 2       # double-buffered x tiles
                + 2 * t * Np * out_bytes)  # double-buffered out tiles

    budget = 12 * 1024 * 1024
    while tm > 16 and _vmem_bytes(tm) > budget:
        tm = _round_up(max(16, tm // 2), 16)

    # Ragged M: zero-pad the slab to a tile multiple (padding rows are junk
    # but sliced away below; zero columns keep the real outputs exact).
    Mp = _round_up(M, tm)
    if Mp != M:
        x_bf = jnp.pad(x_bf, ((0, Mp - M), (0, 0)))

    grid = (Mp // tm,)

    cost = pl.CostEstimate(
        flops=2 * Mp * K * Np,
        transcendentals=0,
        bytes_accessed=Mp * K * 2 + K * Np * 2 + Np * 4 + Mp * Np * out_bytes,
    )

    y = pl.pallas_call(
        _emb_linear_kernel,
        out_shape=jax.ShapeDtypeStruct((Mp, Np), out_dtype),
        grid_spec=pltpu.PrefetchScalarGridSpec(
            num_scalar_prefetch=0,
            grid=grid,
            in_specs=[
                pl.BlockSpec((tm, K), lambda i: (i, 0)),   # x tile per step
                pl.BlockSpec((K, Np), lambda i: (0, 0)),   # whole weight, reused
                pl.BlockSpec((1, Np), lambda i: (0, 0)),   # bias row, reused
            ],
            out_specs=pl.BlockSpec((tm, Np), lambda i: (i, 0)),
        ),
        compiler_params=pltpu.CompilerParams(
            dimension_semantics=("parallel",),
        ),
        cost_estimate=cost,
    )(x_bf, w_bf, b2)

    # Slice off M / N padding.
    if Mp != M or Np != N:
        y = y[:M, :N]
    return y


class EmbLinearPallas:
    """Mirror of the torch EmbLinear: holds Linear params, forward applies them
    to the packed embedding data and passes boundaries through unchanged."""

    def __init__(self, input_size, output_size, key):
        # torch.nn.Linear default init: U(-1/sqrt(fan_in), 1/sqrt(fan_in))
        kw, kb = jax.random.split(key)
        bound = 1.0 / jnp.sqrt(jnp.asarray(input_size, jnp.float32))
        # store weight pre-transposed: [input_size, output_size]
        self.w_t = jax.random.uniform(
            kw, (input_size, output_size), jnp.float32, -bound, bound
        )
        self.b = jax.random.uniform(
            kb, (output_size,), jnp.float32, -bound, bound
        )

    def __call__(self, input_):
        all_embs, boundaries = input_
        # all_embs.apply(lambda d: self.linear(d)) -> map Linear over the data slab
        new_embs = emb_linear_pallas(all_embs, self.w_t, self.b)
        return (new_embs, boundaries)


if __name__ == "__main__":
    key = jax.random.PRNGKey(0)
    k_data, k_params = jax.random.split(key)

    total_tokens = 16      # e.g. batch=2 sequences, seq=8 tokens each, packed
    input_size = 32
    output_size = 64       # deliberately not a multiple of 128: exercises N padding

    all_embs = jax.random.normal(k_data, (total_tokens, input_size), jnp.float32)
    boundaries = [list(range(0, 9)), list(range(0, 9))]  # pass-through metadata

    module = EmbLinearPallas(input_size, output_size, k_params)
    out_embs, out_boundaries = module((all_embs, boundaries))
    out_embs = jax.block_until_ready(out_embs)

    # correctness checks
    assert out_embs.shape == (total_tokens, output_size)
    assert out_boundaries is boundaries

    # bf16-input reference (should match the kernel's MXU path closely)
    ref_bf16 = (
        jnp.dot(all_embs.astype(jnp.bfloat16), module.w_t.astype(jnp.bfloat16),
                preferred_element_type=jnp.float32)
        + module.b
    )
    assert jnp.allclose(out_embs, ref_bf16, atol=1e-4, rtol=1e-4)

    # f32 reference with tolerance loosened for bf16 matmul inputs
    ref_f32 = all_embs @ module.w_t + module.b
    assert jnp.allclose(out_embs, ref_f32, atol=2e-2, rtol=2e-2)

    print("KERNEL_OK")
</pallas_src>

<mosaic_0001>
module attributes {stable_mosaic.version = 11 : i64} {
  func.func @_emb_linear_kernel(%arg0: i32, %arg1: memref<16x32xbf16, #tpu.memory_space<vmem>>, %arg2: memref<32x128xbf16, #tpu.memory_space<vmem>>, %arg3: memref<1x128xf32, #tpu.memory_space<vmem>>, %arg4: memref<16x128xf32, #tpu.memory_space<vmem>>) attributes {dimension_semantics = [#tpu.dimension_semantics<parallel>], iteration_bounds = array<i64: 1>, scalar_prefetch = 0 : i64, scratch_operands = 0 : i64, tpu.core_type = #tpu.core_type<tc>, window_params = [{transform_indices = @transform_0, window_bounds = array<i64: 16, 32>}, {pipeline_mode = #tpu.pipeline_mode<synchronous>, transform_indices = @transform_1, window_bounds = array<i64: 32, 128>}, {pipeline_mode = #tpu.pipeline_mode<synchronous>, transform_indices = @transform_2, window_bounds = array<i64: 1, 128>}, {transform_indices = @transform_3, window_bounds = array<i64: 16, 128>}]} {
    %c0 = arith.constant 0 : index
    %c0_0 = arith.constant 0 : index
    %0 = vector.load %arg1[%c0, %c0_0] : memref<16x32xbf16, #tpu.memory_space<vmem>>, vector<16x32xbf16>
    %c0_1 = arith.constant 0 : index
    %c0_2 = arith.constant 0 : index
    %1 = vector.load %arg2[%c0_1, %c0_2] : memref<32x128xbf16, #tpu.memory_space<vmem>>, vector<32x128xbf16>
    %cst = arith.constant dense<0.000000e+00> : vector<16x128xf32>
    %2 = tpu.matmul %0, %1, %cst {dimension_numbers = #tpu.dot_dimension_numbers<[1], [0], [0], [1], [0, 0, 1, 1], [], []>} : vector<16x32xbf16>, vector<32x128xbf16>, vector<16x128xf32> -> vector<16x128xf32>
    %c0_3 = arith.constant 0 : index
    %c0_4 = arith.constant 0 : index
    %3 = vector.load %arg3[%c0_3, %c0_4] : memref<1x128xf32, #tpu.memory_space<vmem>>, vector<1x128xf32>
    %4 = vector.broadcast %3 : vector<1x128xf32> to vector<16x128xf32>
    %5 = arith.addf %2, %4 : vector<16x128xf32>
    %c0_5 = arith.constant 0 : index
    %c0_6 = arith.constant 0 : index
    %6 = vector.load %arg4[%c0_5, %c0_6] : memref<16x128xf32, #tpu.memory_space<vmem>>, vector<16x128xf32>
    tpu.vector_store %arg4[%c0_5, %c0_6], %5 {strides = array<i32>} : memref<16x128xf32, #tpu.memory_space<vmem>>, vector<16x128xf32>,
    return
  }
  func.func @transform_0(%arg0: i32) -> (i32, i32) {
    %c0_i32 = arith.constant 0 : i32
    %c0_i32_0 = arith.constant 0 : i32
    return %arg0, %c0_i32 : i32, i32
  }
  func.func @transform_1(%arg0: i32) -> (i32, i32) {
    %c0_i32 = arith.constant 0 : i32
    %c0_i32_0 = arith.constant 0 : i32
    %c0_i32_1 = arith.constant 0 : i32
    return %c0_i32, %c0_i32_0 : i32, i32
  }
  func.func @transform_2(%arg0: i32) -> (i32, i32) {
    %c0_i32 = arith.constant 0 : i32
    %c0_i32_0 = arith.constant 0 : i32
    %c0_i32_1 = arith.constant 0 : i32
    return %c0_i32, %c0_i32_0 : i32, i32
  }
  func.func @transform_3(%arg0: i32) -> (i32, i32) {
    %c0_i32 = arith.constant 0 : i32
    %c0_i32_0 = arith.constant 0 : i32
    return %arg0, %c0_i32 : i32, i32
  }
}

</mosaic_0001>

<llo_original>
// kernel: emb_linear_pallas.1
$region0: #{emb_linear_pallas.1}
  #allocation0 [shape = 'u32[]', space=smem, size = 0x4, offset = 0x4, fixed_abs, tag = 'smem constant byte address 0x4 - core index']
  #allocation1 [shape = 'u32[144,128]{1,0:T(1,128)}', space=vmem, size = 0x12000, scoped, tag = 'internal scratch']
  %s0 = inlined_call_operand.vmem [shape: bf16[16,32], index: 0, kind: input, shape index: {}]
  %s1 = inlined_call_operand.vmem [shape: bf16[32,128], index: 1, kind: input, shape index: {}]
  %s2 = inlined_call_operand.vmem [shape: f32[1,128], index: 2, kind: input, shape index: {}]
  %s3 = inlined_call_operand.hbm [shape: f32[16,128], index: 3, kind: output, shape index: {}]
  %s4 = sld [smem:[#allocation0]]
  $region22: #{emb_linear_pallas.1} parent=0
    _
  %s6 = ssub.s32 1, %s4
  %s7 = scalar_select 0, %s6, %s4
  $region1: #{emb_linear_pallas.1} parent=0
    #allocation2 [shape = 'u8[8192]{0}', space=vmem, size = 0x2000, scoped, tag = 'output window, operand 0, single buffered']
    #allocation3 [shape = 's32[1]{0}', space=sflag, size = 0x4, scoped, tag = 'scoped memory for emb_linear_pallas.1']
    %8 = vsyncpa [#allocation3], 0
    // Predicated region
    $region2: #{emb_linear_pallas.1} parent=1 // pred_check
      _
    $region3: #{emb_linear_pallas.1} parent=1 // pred_check_branch
      %10 = sbr.rel (0) target = $region5
    $region4: #{emb_linear_pallas.1} parent=1 // pred_region
      _
    $region5: #{emb_linear_pallas.1} parent=1 // pred_fallthru
      _
    // Predicated region
    $region6: #{emb_linear_pallas.1} parent=1 // pred_check
      _
    $region7: #{emb_linear_pallas.1} parent=1 // pred_check_branch
      %12 = sbr.rel (0) target = $region9
    $region8: #{emb_linear_pallas.1} parent=1 // pred_region
      _
    $region9: #{emb_linear_pallas.1} parent=1 // pred_fallthru
      _
    // Predicated region
    $region10: #{emb_linear_pallas.1} parent=1 // pred_check
      _
    $region11: #{emb_linear_pallas.1} parent=1 // pred_check_branch
      %14 = sbr.rel (0) target = $region13
    $region12: #{emb_linear_pallas.1} parent=1 // pred_region
      _
    $region13: #{emb_linear_pallas.1} parent=1 // pred_fallthru
      _
    %v16 = vld [vmem:[%s0] sm:$0xf]
    %v17 = vld [vmem:[%s0 + $0x4] sm:$0xf]
    %v18 = vld [vmem:[%s1] sm:$0xf]
    %v19 = vld [vmem:[%s1 + $0x4] sm:$0xf]
    %v20 = vld [vmem:[%s1 + $0x8] sm:$0xf]
    %v21 = vld [vmem:[%s1 + $0xc] sm:$0xf]
    %v22 = vld [vmem:[%s2] sm:$0x1]
    %v24 = vlaneseq
    %v25 = vshrl.u32 %v24, 7
    %v26 = vsub.s32 0, %v25
    %v27 = vrot.slane %v22, %v26
    %v31 = vunpack.c.l.b16 %v16
    %v32 = vunpack.c.l.b16 %v17
    %v33 = vpack.c.b16 %v32, %v31
    %v38 = vunpack.c.l.b16 %v18
    %v39 = vunpack.c.l.b16 %v19
    %v40 = vunpack.c.l.b16 %v20
    %v41 = vunpack.c.l.b16 %v21
    %v42 = vpack.c.b16 %v39, %v38
    %v43 = vpack.c.b16 %v41, %v40
    %vm46 = vcmask 261120
    %v48 = vsel %vm46, %v33, 0
    %50 = vmatprep.subr.bf16.mxu0 0
    %51 = vmatpush1.bf16.msra.mxu0 %v42
    %52 = vmatprep.subr.bf16.mxu0 0
    %53 = vmatpush1.bf16.msra.mxu0 %v43
    %54 = vmatprep.subr.bf16.mxu0 0
    %55 = vmatpush1.bf16.msra.mxu0 0
    %56 = vmatprep.subr.bf16.mxu0 0
    %57 = vmatpush1.bf16.msra.mxu0 0
    %58 = vmatprep.subr.bf16.mxu0 0
    %59 = vmatpush1.bf16.msra.mxu0 0
    %60 = vmatprep.subr.bf16.mxu0 0
    %61 = vmatpush1.bf16.msra.mxu0 0
    %62 = vmatprep.subr.bf16.mxu0 0
    %63 = vmatpush1.bf16.msra.mxu0 0
    %64 = vmatprep.subr.bf16.mxu0 0
    %65 = vmatpush1.bf16.msra.mxu0 0
    %66 = vmatprep.subr.bf16.mxu0 0
    %67 = vmatpush1.bf16.msra.mxu0 0
    %68 = vmatprep.subr.bf16.mxu0 0
    %69 = vmatpush1.bf16.msra.mxu0 0
    %70 = vmatprep.subr.bf16.mxu0 0
    %71 = vmatpush1.bf16.msra.mxu0 0
    %72 = vmatprep.subr.bf16.mxu0 0
    %73 = vmatpush1.bf16.msra.mxu0 0
    %74 = vmatprep.subr.bf16.mxu0 0
    %75 = vmatpush1.bf16.msra.mxu0 0
    %76 = vmatprep.subr.bf16.mxu0 0
    %77 = vmatpush1.bf16.msra.mxu0 0
    %78 = vmatprep.subr.bf16.mxu0 0
    %79 = vmatpush1.bf16.msra.mxu0 0
    %80 = vmatprep.subr.bf16.mxu0 0
    %81 = vmatpush1.bf16.msra.mxu0 0
    %82 = vmatprep.mubr.bf16.mxu0 0
    %83 = vmatmul.mubr.bf16.gmra.mrb[0].mxu0 %v48
    %v84 = vpop.f32.mrb[0].mxu0
    %v85 = vadd.f32 %v27, %v84
    %v86 = vpop.f32.mrb[0].mxu0
    %v87 = vpop.f32.mrb[0].mxu0
    %v88 = vadd.f32 %v27, %v87
    %v89 = vpop.f32.mrb[0].mxu0
    %90 = vdwg.mxu0
    %91 = vst [vmem:[#allocation2] sm:$0xff] %v85
    %92 = vst [vmem:[#allocation2 + $0x8] sm:$0xff] %v88
    // Predicated region
    $region14: #{emb_linear_pallas.1} parent=1 // pred_check
      _
    $region15: #{emb_linear_pallas.1} parent=1 // pred_check_branch
      %94 = sbr.rel (0) target = $region17
    $region16: #{emb_linear_pallas.1} parent=1 // pred_region
      %s96 = ssub.s32 256, 256
      %97 = vsyncadd [#allocation3], %s96
      %s98 = sshll.u32 [#allocation2], 4
      %s99 = int_to_ptr.vmem [resolvable:$true] %s98
      %104 = dma.vmem_to_hbm [thread:$0]  %s99, 256, %s3, [#allocation3], 128, 128, 8
    $region17: #{emb_linear_pallas.1} parent=1 // pred_fallthru
      _
    // Predicated region
    $region18: #{emb_linear_pallas.1} parent=1 // pred_check
      _
    $region19: #{emb_linear_pallas.1} parent=1 // pred_check_branch
      %106 = sbr.rel (0) target = $region21
    $region20: #{emb_linear_pallas.1} parent=1 // pred_region
      %107 = dma.done [#allocation3], 256
    $region21: #{emb_linear_pallas.1} parent=1 // pred_fallthru
      _
    %108 = vsyncpa [#allocation3], 1

</llo_original>
